<compile_context>
chip_gen: v6e
topology: v6e:2x2x1
jax: 0.10.0
libtpu: 0.0.40
codegen_flags: <defaults>
</compile_context>

<pallas_src>
import jax
import jax.numpy as jnp
from jax.experimental import pallas as pl
from jax.experimental.pallas import tpu as pltpu

NUM_FEATURES = 10   # decoder(x) requires x dim == 10 (see note above)
ENC_DIM = 10        # encoder output width
DEC_OFF = 10        # decoder output occupies lanes 10..19 of the stage-2 result
K0 = 16             # stage-0 contraction (10 features zero-extended to 16)
NPAD = 128          # padded lane width of every packed stage


def autoencoder_kernel(x_ref, w0_ref, w_ref, b_ref, enc_ref, dec_ref):
    """x_ref: (TB,10); w0_ref: (16,128); w_ref: (2,128,128); b_ref: (3,128);
    enc_ref: (TB,10); dec_ref: (TB,10)."""
    tb = x_ref.shape[0]

    # Raw 10-lane input tile -> compute dtype -> zero-extend to K0=16 lanes in
    # VMEM (rows 10..15 of w0 are zero, so the product is exact).
    x = x_ref[...].astype(w0_ref.dtype)                                # (TB, 10)
    x_k0 = jnp.concatenate(
        [x, jnp.zeros((tb, K0 - NUM_FEATURES), x.dtype)], axis=1)      # (TB, 16)

    b = b_ref[...]                                                     # (3, 128) f32

    # stage 0:  x @ [w1 | w4]       (+ bias, ReLU) -- f32 accumulation
    h = jnp.dot(x_k0, w0_ref[...], preferred_element_type=jnp.float32)
    h = jnp.maximum(h + b[0:1, :], 0.0)
    # stage 1:  blockdiag(w2, w5)   (+ bias, ReLU)
    h = jnp.dot(h.astype(w_ref.dtype), w_ref[0],
                preferred_element_type=jnp.float32)
    h = jnp.maximum(h + b[1:2, :], 0.0)
    # stage 2:  blockdiag(w3, w6)   (+ bias)
    h = jnp.dot(h.astype(w_ref.dtype), w_ref[1],
                preferred_element_type=jnp.float32)
    h = h + b[2:3, :]

    # split: lanes 0..9 -> encoder (identity), lanes 10..19 -> decoder (tanh,
    # computed on just 10 lanes to keep EUP work minimal on v5e).
    enc_ref[...] = h[:, 0:ENC_DIM].astype(enc_ref.dtype)
    dec_ref[...] = jnp.tanh(h[:, DEC_OFF:DEC_OFF + NUM_FEATURES]).astype(dec_ref.dtype)


def pack_params(params, compute_dtype=jnp.bfloat16):
    """Pack the 12 per-layer tensors into the kernel's resident slabs.

    W0 (16,128):  rows 0:10 -> cols 0:40 = w1, cols 40:60 = w4
    W  (2,128,128):
      stage 1: rows 0:40 -> cols 0:20 = w2 ; rows 40:60 -> cols 20:60 = w5
      stage 2: rows 0:20 -> cols 0:10 = w3 ; rows 20:60 -> cols 10:20 = w6
    B  (3,128): matching bias rows (kept f32, added post-MXU).
    """
    W0 = jnp.zeros((K0, NPAD), jnp.float32)
    W0 = W0.at[0:10, 0:40].set(params["w1"])
    W0 = W0.at[0:10, 40:60].set(params["w4"])

    W = jnp.zeros((2, NPAD, NPAD), jnp.float32)
    W = W.at[0, 0:40, 0:20].set(params["w2"])
    W = W.at[0, 40:60, 20:60].set(params["w5"])
    W = W.at[1, 0:20, 0:10].set(params["w3"])
    W = W.at[1, 20:60, 10:20].set(params["w6"])

    B = jnp.zeros((3, NPAD), jnp.float32)
    B = B.at[0, 0:40].set(params["b1"][0])
    B = B.at[0, 40:60].set(params["b4"][0])
    B = B.at[1, 0:20].set(params["b2"][0])
    B = B.at[1, 20:60].set(params["b5"][0])
    B = B.at[2, 0:10].set(params["b3"][0])
    B = B.at[2, 10:20].set(params["b6"][0])

    return W0.astype(compute_dtype), W.astype(compute_dtype), B


def _round_up(a, m):
    return (a + m - 1) // m * m


def autoencoder_forward(x, params, *, compute_dtype=jnp.bfloat16, tile_b=512):
    """x: (B, 10) float32.  Returns (enc (B,10), dec (B,10)) in float32."""
    Bsz, F = x.shape
    assert F == NUM_FEATURES, "reference forward feeds x to decoder => F must be 10"

    W0, W, Bb = pack_params(params, compute_dtype)

    # Batch tile: as large as tile_b (sweep 512-1024 to amortize ~0.35 us/step
    # grid overhead) but capped so the grid has >=2 steps (v7x megacore).
    TB = max(8, min(tile_b, _round_up(pl.cdiv(Bsz, 2), 8)))
    B_pad = _round_up(Bsz, TB)
    grid = (B_pad // TB,)

    # Only pad batch rows (10 lanes stay raw -> no wide padded array in HBM).
    x_in = x if B_pad == Bsz else jnp.pad(x, ((0, B_pad - Bsz), (0, 0)))

    cost = pl.CostEstimate(
        flops=2 * B_pad * NPAD * (K0 + NPAD + NPAD),
        transcendentals=B_pad * NUM_FEATURES,
        bytes_accessed=int(x_in.size * x_in.dtype.itemsize
                           + W0.size * W0.dtype.itemsize
                           + W.size * W.dtype.itemsize
                           + Bb.size * Bb.dtype.itemsize
                           + 2 * B_pad * NUM_FEATURES * 4),
    )

    enc_pad, dec_pad = pl.pallas_call(
        autoencoder_kernel,
        out_shape=(jax.ShapeDtypeStruct((B_pad, ENC_DIM), jnp.float32),
                   jax.ShapeDtypeStruct((B_pad, NUM_FEATURES), jnp.float32)),
        grid=grid,
        in_specs=[
            pl.BlockSpec((TB, NUM_FEATURES), lambda i: (i, 0)),   # raw 10-lane x tile
            pl.BlockSpec((K0, NPAD), lambda i: (0, 0)),           # stage-0 weights (resident)
            pl.BlockSpec((2, NPAD, NPAD), lambda i: (0, 0, 0)),   # stage-1/2 weights (resident)
            pl.BlockSpec((3, NPAD), lambda i: (0, 0)),            # biases (resident, f32)
        ],
        out_specs=(
            pl.BlockSpec((TB, ENC_DIM), lambda i: (i, 0)),        # enc: 10 lanes
            pl.BlockSpec((TB, NUM_FEATURES), lambda i: (i, 0)),   # dec: 10 lanes
        ),
        compiler_params=pltpu.CompilerParams(
            dimension_semantics=("parallel",),                    # shard batch grid over TCs
        ),
        cost_estimate=cost,
    )(x_in, W0, W, Bb)

    if B_pad != Bsz:
        enc_pad = enc_pad[:Bsz]
        dec_pad = dec_pad[:Bsz]
    return enc_pad, dec_pad


def init_params(key, num_features):
    """nn.Linear-style U(-1/sqrt(fan_in), 1/sqrt(fan_in)) init.
    Weights stored pre-transposed as (in, out); biases as (1, out)."""
    dims = [
        (num_features, 40), (40, 20), (20, 10),     # encoder
        (10, 20), (20, 40), (40, num_features),     # decoder
    ]
    params = {}
    keys = jax.random.split(key, 2 * len(dims))
    for i, (fan_in, fan_out) in enumerate(dims):
        bound = 1.0 / (fan_in ** 0.5)
        params[f"w{i + 1}"] = jax.random.uniform(
            keys[2 * i], (fan_in, fan_out), jnp.float32, -bound, bound)
        params[f"b{i + 1}"] = jax.random.uniform(
            keys[2 * i + 1], (1, fan_out), jnp.float32, -bound, bound)
    return params


def reference_forward(x, params):
    """Pure-JAX reference matching the PyTorch forward semantics."""
    h = jnp.maximum(x @ params["w1"] + params["b1"], 0.0)
    h = jnp.maximum(h @ params["w2"] + params["b2"], 0.0)
    enc = h @ params["w3"] + params["b3"]
    d = jnp.maximum(x @ params["w4"] + params["b4"], 0.0)
    d = jnp.maximum(d @ params["w5"] + params["b5"], 0.0)
    dec = jnp.tanh(d @ params["w6"] + params["b6"])
    return enc, dec


if __name__ == "__main__":
    BATCH = 256   # exercises a 2-step batch grid (TB = 128)

    key = jax.random.PRNGKey(0)
    kx, kp = jax.random.split(key)
    x = jax.random.normal(kx, (BATCH, NUM_FEATURES), dtype=jnp.float32)
    params = init_params(kp, NUM_FEATURES)

    enc_gold, dec_gold = reference_forward(x, params)

    # f32 matmul path (tight check)
    enc, dec = autoencoder_forward(x, params, compute_dtype=jnp.float32)
    enc, dec = jax.block_until_ready((enc, dec))
    assert enc.shape == (BATCH, ENC_DIM) and dec.shape == (BATCH, NUM_FEATURES)
    assert jnp.allclose(enc, enc_gold, atol=1e-4, rtol=1e-4)
    assert jnp.allclose(dec, dec_gold, atol=1e-4, rtol=1e-4)

    # default path: bf16 matmul inputs (full-rate MXU), f32 accumulation
    enc16, dec16 = autoencoder_forward(x, params)
    enc16, dec16 = jax.block_until_ready((enc16, dec16))
    assert jnp.allclose(enc16, enc_gold, atol=1e-1, rtol=1e-1)
    assert jnp.allclose(dec16, dec_gold, atol=1e-1, rtol=1e-1)

    # ragged batch: exercises the row-pad path (B=100 -> TB=56, grid=(2,))
    xr = x[:100]
    enc_r_gold, dec_r_gold = reference_forward(xr, params)
    enc_r, dec_r = autoencoder_forward(xr, params, compute_dtype=jnp.float32)
    enc_r, dec_r = jax.block_until_ready((enc_r, dec_r))
    assert enc_r.shape == (100, ENC_DIM) and dec_r.shape == (100, NUM_FEATURES)
    assert jnp.allclose(enc_r, enc_r_gold, atol=1e-4, rtol=1e-4)
    assert jnp.allclose(dec_r, dec_r_gold, atol=1e-4, rtol=1e-4)

    print("KERNEL_OK")
</pallas_src>

<mosaic_0001>
module attributes {stable_mosaic.version = 11 : i64} {
  func.func @autoencoder_kernel(%arg0: i32, %arg1: memref<128x10xf32, #tpu.memory_space<vmem>>, %arg2: memref<16x128xf32, #tpu.memory_space<vmem>>, %arg3: memref<2x128x128xf32, #tpu.memory_space<vmem>>, %arg4: memref<3x128xf32, #tpu.memory_space<vmem>>, %arg5: memref<128x10xf32, #tpu.memory_space<vmem>>, %arg6: memref<128x10xf32, #tpu.memory_space<vmem>>) attributes {dimension_semantics = [#tpu.dimension_semantics<parallel>], iteration_bounds = array<i64: 2>, scalar_prefetch = 0 : i64, scratch_operands = 0 : i64, tpu.core_type = #tpu.core_type<tc>, window_params = [{transform_indices = @transform_0, window_bounds = array<i64: 128, 10>}, {pipeline_mode = #tpu.pipeline_mode<synchronous>, transform_indices = @transform_1, window_bounds = array<i64: 16, 128>}, {pipeline_mode = #tpu.pipeline_mode<synchronous>, transform_indices = @transform_2, window_bounds = array<i64: 2, 128, 128>}, {pipeline_mode = #tpu.pipeline_mode<synchronous>, transform_indices = @transform_3, window_bounds = array<i64: 3, 128>}, {transform_indices = @transform_4, window_bounds = array<i64: 128, 10>}, {transform_indices = @transform_5, window_bounds = array<i64: 128, 10>}]} {
    %c0 = arith.constant 0 : index
    %c0_0 = arith.constant 0 : index
    %0 = vector.load %arg1[%c0, %c0_0] : memref<128x10xf32, #tpu.memory_space<vmem>>, vector<128x10xf32>
    %cst = arith.constant 0.000000e+00 : f32
    %1 = vector.broadcast %cst : f32 to vector<128x6xf32>
    %2 = tpu.concatenate %0, %1 in 1 : vector<128x10xf32>, vector<128x6xf32> -> vector<128x16xf32>
    %c0_1 = arith.constant 0 : index
    %c0_2 = arith.constant 0 : index
    %3 = vector.load %arg4[%c0_1, %c0_2] : memref<3x128xf32, #tpu.memory_space<vmem>>, vector<3x128xf32>
    %c0_3 = arith.constant 0 : index
    %c0_4 = arith.constant 0 : index
    %4 = vector.load %arg2[%c0_3, %c0_4] : memref<16x128xf32, #tpu.memory_space<vmem>>, vector<16x128xf32>
    %cst_5 = arith.constant dense<0.000000e+00> : vector<128x128xf32>
    %5 = tpu.matmul %2, %4, %cst_5 {dimension_numbers = #tpu.dot_dimension_numbers<[1], [0], [0], [1], [0, 0, 1, 1], [], []>} : vector<128x16xf32>, vector<16x128xf32>, vector<128x128xf32> -> vector<128x128xf32>
    %6 = vector.extract_strided_slice %3 {offsets = [0, 0], sizes = [1, 128], strides = [1, 1]} : vector<3x128xf32> to vector<1x128xf32>
    %7 = vector.broadcast %6 : vector<1x128xf32> to vector<128x128xf32>
    %8 = arith.addf %5, %7 : vector<128x128xf32>
    %cst_6 = arith.constant 0.000000e+00 : f32
    %9 = vector.broadcast %cst_6 : f32 to vector<128x128xf32>
    %10 = arith.maximumf %8, %9 : vector<128x128xf32>
    %c0_7 = arith.constant 0 : index
    %c0_8 = arith.constant 0 : index
    %c0_9 = arith.constant 0 : index
    %11 = vector.load %arg3[%c0_7, %c0_8, %c0_9] : memref<2x128x128xf32, #tpu.memory_space<vmem>>, vector<1x128x128xf32>
    %12 = vector.shape_cast %11 : vector<1x128x128xf32> to vector<128x128xf32>
    %cst_10 = arith.constant dense<0.000000e+00> : vector<128x128xf32>
    %13 = tpu.matmul %10, %12, %cst_10 {dimension_numbers = #tpu.dot_dimension_numbers<[1], [0], [0], [1], [0, 0, 1, 1], [], []>} : vector<128x128xf32>, vector<128x128xf32>, vector<128x128xf32> -> vector<128x128xf32>
    %14 = vector.extract_strided_slice %3 {offsets = [1, 0], sizes = [1, 128], strides = [1, 1]} : vector<3x128xf32> to vector<1x128xf32>
    %15 = vector.broadcast %14 : vector<1x128xf32> to vector<128x128xf32>
    %16 = arith.addf %13, %15 : vector<128x128xf32>
    %cst_11 = arith.constant 0.000000e+00 : f32
    %17 = vector.broadcast %cst_11 : f32 to vector<128x128xf32>
    %18 = arith.maximumf %16, %17 : vector<128x128xf32>
    %c1 = arith.constant 1 : index
    %c0_12 = arith.constant 0 : index
    %c0_13 = arith.constant 0 : index
    %19 = vector.load %arg3[%c1, %c0_12, %c0_13] : memref<2x128x128xf32, #tpu.memory_space<vmem>>, vector<1x128x128xf32>
    %20 = vector.shape_cast %19 : vector<1x128x128xf32> to vector<128x128xf32>
    %cst_14 = arith.constant dense<0.000000e+00> : vector<128x128xf32>
    %21 = tpu.matmul %18, %20, %cst_14 {dimension_numbers = #tpu.dot_dimension_numbers<[1], [0], [0], [1], [0, 0, 1, 1], [], []>} : vector<128x128xf32>, vector<128x128xf32>, vector<128x128xf32> -> vector<128x128xf32>
    %22 = vector.extract_strided_slice %3 {offsets = [2, 0], sizes = [1, 128], strides = [1, 1]} : vector<3x128xf32> to vector<1x128xf32>
    %23 = vector.broadcast %22 : vector<1x128xf32> to vector<128x128xf32>
    %24 = arith.addf %21, %23 : vector<128x128xf32>
    %25 = vector.extract_strided_slice %24 {offsets = [0, 0], sizes = [128, 10], strides = [1, 1]} : vector<128x128xf32> to vector<128x10xf32>
    %c0_15 = arith.constant 0 : index
    %c0_16 = arith.constant 0 : index
    %26 = vector.load %arg5[%c0_15, %c0_16] : memref<128x10xf32, #tpu.memory_space<vmem>>, vector<128x10xf32>
    tpu.vector_store %arg5[%c0_15, %c0_16], %25 {strides = array<i32>} : memref<128x10xf32, #tpu.memory_space<vmem>>, vector<128x10xf32>,
    %27 = vector.extract_strided_slice %24 {offsets = [0, 10], sizes = [128, 10], strides = [1, 1]} : vector<128x128xf32> to vector<128x10xf32>
    %28 = math.tanh %27 : vector<128x10xf32>
    %c0_17 = arith.constant 0 : index
    %c0_18 = arith.constant 0 : index
    %29 = vector.load %arg6[%c0_17, %c0_18] : memref<128x10xf32, #tpu.memory_space<vmem>>, vector<128x10xf32>
    tpu.vector_store %arg6[%c0_17, %c0_18], %28 {strides = array<i32>} : memref<128x10xf32, #tpu.memory_space<vmem>>, vector<128x10xf32>,
    return
  }
  func.func @transform_0(%arg0: i32) -> (i32, i32) {
    %c0_i32 = arith.constant 0 : i32
    %c0_i32_0 = arith.constant 0 : i32
    return %arg0, %c0_i32 : i32, i32
  }
  func.func @transform_1(%arg0: i32) -> (i32, i32) {
    %c0_i32 = arith.constant 0 : i32
    %c0_i32_0 = arith.constant 0 : i32
    %c0_i32_1 = arith.constant 0 : i32
    return %c0_i32, %c0_i32_0 : i32, i32
  }
  func.func @transform_2(%arg0: i32) -> (i32, i32, i32) {
    %c0_i32 = arith.constant 0 : i32
    %c0_i32_0 = arith.constant 0 : i32
    %c0_i32_1 = arith.constant 0 : i32
    %c0_i32_2 = arith.constant 0 : i32
    return %c0_i32, %c0_i32_0, %c0_i32_1 : i32, i32, i32
  }
  func.func @transform_3(%arg0: i32) -> (i32, i32) {
    %c0_i32 = arith.constant 0 : i32
    %c0_i32_0 = arith.constant 0 : i32
    %c0_i32_1 = arith.constant 0 : i32
    return %c0_i32, %c0_i32_0 : i32, i32
  }
  func.func @transform_4(%arg0: i32) -> (i32, i32) {
    %c0_i32 = arith.constant 0 : i32
    %c0_i32_0 = arith.constant 0 : i32
    return %arg0, %c0_i32 : i32, i32
  }
  func.func @transform_5(%arg0: i32) -> (i32, i32) {
    %c0_i32 = arith.constant 0 : i32
    %c0_i32_0 = arith.constant 0 : i32
    return %arg0, %c0_i32 : i32, i32
  }
}

</mosaic_0001>

<llo_original>
// kernel: tpu_custom_call.1
$region0: #{tpu_custom_call.1}
  #allocation0 [shape = 'u32[]', space=smem, size = 0x4, offset = 0x4, fixed_abs, tag = 'smem constant byte address 0x4 - core index']
  #allocation1 [shape = 'u32[144,128]{1,0:T(1,128)}', space=vmem, size = 0x12000, scoped, tag = 'internal scratch']
  %s0 = inlined_call_operand.vmem [shape: f32[256,10], index: 0, kind: input, shape index: {}]
  %s1 = inlined_call_operand.vmem [shape: f32[16,128], index: 1, kind: input, shape index: {}]
  %s2 = inlined_call_operand.vmem [shape: f32[2,128,128], index: 2, kind: input, shape index: {}]
  %s3 = inlined_call_operand.vmem [shape: f32[3,128], index: 3, kind: input, shape index: {}]
  %s4 = inlined_call_operand.vmem [shape: f32[256,10], index: 4, kind: output, shape index: {0}]
  %s5 = inlined_call_operand.vmem [shape: f32[256,10], index: 5, kind: output, shape index: {1}]
  %6 = xla_tuple %s4, %s5
  %s7 = sld [smem:[#allocation0]]
  $region57: #{tpu_custom_call.1} parent=0
    _
  %s9 = ssub.s32 1, %s7
  %s10 = scalar_select 0, %s9, %s7
  loop: start=0, step=1, limit=4
  $region2: #{tpu_custom_call.1} parent=0 // loop_pre_header
    _
  $region3: #{tpu_custom_call.1} parent=0 // loop_header
    %s12 = sphi 0, %s16
    %p13 = scmp.ge.s32.totalorder %s12, 4
    %s22 = sphi 0, %s24
    %s25 = sphi 0, %s22
    %s26 = sphi 0, %s25
    %s42 = sphi 0, %s26
    %s46 = sphi 0, %s46
    %s48 = sphi 0, %s46
    %s49 = sphi 0, %s48
    %s63 = sphi 0, %s49
    %s67 = sphi 0, %s67
    %s69 = sphi 0, %s67
    %s70 = sphi 0, %s69
    %s84 = sphi 0, %s70
    %s88 = sphi 0, %s88
    %s90 = sphi 0, %s88
    %s91 = sphi 0, %s90
    %s105 = sphi 0, %s91
    %s111 = sphi 0, %s113
    %s114 = sphi 0, %s111
    %s115 = sphi 0, %s114
    %s131 = sphi 0, %s115
    %s137 = sphi 0, %s139
    %s140 = sphi 0, %s137
    %s141 = sphi 0, %s140
    %s157 = sphi 0, %s141
  $region4: #{tpu_custom_call.1} parent=0 // loop_header_branch
    %15 = sbr.rel (%p13) target = $region8
  $region5: #{tpu_custom_call.1} parent=0 // loop_body
    %s17 = ssub.s32 %s12, 1
    %s18 = ssub.s32 %s12, 2
    %s19 = sadd.s32 %s12, 1
    %s20 = ssub.s32 %s12, %s19
    %p21 = scmp.eq.s32.totalorder %s20, 0
    %s23 = sadd.s32 %s22, 1
    %s24 = scalar_select %p21, %s22, %s23
    %p27 = pneg %p21
    %p28 = scmp.eq.s32.totalorder %s12, 1
    %p29 = por %p27, %p28
    %p30 = scmp.ne.s32.totalorder %s22, %s25
    %p31 = scmp.eq.s32.totalorder %s12, 0
    %p32 = por %p30, %p31
    %p33 = scmp.ne.s32.totalorder %s22, %s25
    %p34 = scmp.eq.s32.totalorder %s17, 1
    %p35 = por %p33, %p34
    %p36 = scmp.ne.s32.totalorder %s25, %s26
    %p37 = scmp.eq.s32.totalorder %s17, 0
    %p38 = por %p36, %p37
    %p39 = scmp.ne.s32.totalorder %s25, %s26
    %p40 = scmp.eq.s32.totalorder %s18, 1
    %p41 = por %p39, %p40
    %p43 = scmp.ne.s32.totalorder %s26, %s42
    %p44 = scmp.eq.s32.totalorder %s18, 0
    %p45 = por %p43, %p44
    %s47 = sadd.s32 %s46, 1
    %p50 = scmp.eq.s32.totalorder %s12, 1
    %p51 = scmp.ne.s32.totalorder %s46, %s48
    %p52 = scmp.eq.s32.totalorder %s12, 0
    %p53 = por %p51, %p52
    %p54 = scmp.ne.s32.totalorder %s46, %s48
    %p55 = scmp.eq.s32.totalorder %s17, 1
    %p56 = por %p54, %p55
    %p57 = scmp.ne.s32.totalorder %s48, %s49
    %p58 = scmp.eq.s32.totalorder %s17, 0
    %p59 = por %p57, %p58
    %p60 = scmp.ne.s32.totalorder %s48, %s49
    %p61 = scmp.eq.s32.totalorder %s18, 1
    %p62 = por %p60, %p61
    %p64 = scmp.ne.s32.totalorder %s49, %s63
    %p65 = scmp.eq.s32.totalorder %s18, 0
    %p66 = por %p64, %p65
    %s68 = sadd.s32 %s67, 1
    %p71 = scmp.eq.s32.totalorder %s12, 1
    %p72 = scmp.ne.s32.totalorder %s67, %s69
    %p73 = scmp.eq.s32.totalorder %s12, 0
    %p74 = por %p72, %p73
    %p75 = scmp.ne.s32.totalorder %s67, %s69
    %p76 = scmp.eq.s32.totalorder %s17, 1
    %p77 = por %p75, %p76
    %p78 = scmp.ne.s32.totalorder %s69, %s70
    %p79 = scmp.eq.s32.totalorder %s17, 0
    %p80 = por %p78, %p79
    %p81 = scmp.ne.s32.totalorder %s69, %s70
    %p82 = scmp.eq.s32.totalorder %s18, 1
    %p83 = por %p81, %p82
    %p85 = scmp.ne.s32.totalorder %s70, %s84
    %p86 = scmp.eq.s32.totalorder %s18, 0
    %p87 = por %p85, %p86
    %s89 = sadd.s32 %s88, 1
    %p92 = scmp.eq.s32.totalorder %s12, 1
    %p93 = scmp.ne.s32.totalorder %s88, %s90
    %p94 = scmp.eq.s32.totalorder %s12, 0
    %p95 = por %p93, %p94
    %p96 = scmp.ne.s32.totalorder %s88, %s90
    %p97 = scmp.eq.s32.totalorder %s17, 1
    %p98 = por %p96, %p97
    %p99 = scmp.ne.s32.totalorder %s90, %s91
    %p100 = scmp.eq.s32.totalorder %s17, 0
    %p101 = por %p99, %p100
    %p102 = scmp.ne.s32.totalorder %s90, %s91
    %p103 = scmp.eq.s32.totalorder %s18, 1
    %p104 = por %p102, %p103
    %p106 = scmp.ne.s32.totalorder %s91, %s105
    %p107 = scmp.eq.s32.totalorder %s18, 0
    %p108 = por %p106, %p107
    %s109 = ssub.s32 %s12, %s19
    %p110 = scmp.eq.s32.totalorder %s109, 0
    %s112 = sadd.s32 %s111, 1
    %s113 = scalar_select %p110, %s111, %s112
    %p116 = pneg %p110
    %p117 = scmp.eq.s32.totalorder %s12, 1
    %p118 = por %p116, %p117
    %p119 = scmp.ne.s32.totalorder %s111, %s114
    %p120 = scmp.eq.s32.totalorder %s12, 0
    %p121 = por %p119, %p120
    %p122 = scmp.ne.s32.totalorder %s111, %s114
    %p123 = scmp.eq.s32.totalorder %s17, 1
    %p124 = por %p122, %p123
    %p125 = scmp.ne.s32.totalorder %s114, %s115
    %p126 = scmp.eq.s32.totalorder %s17, 0
    %p127 = por %p125, %p126
    %p128 = scmp.ne.s32.totalorder %s114, %s115
    %p129 = scmp.eq.s32.totalorder %s18, 1
    %p130 = por %p128, %p129
    %p132 = scmp.ne.s32.totalorder %s115, %s131
    %p133 = scmp.eq.s32.totalorder %s18, 0
    %p134 = por %p132, %p133
    %s135 = ssub.s32 %s12, %s19
    %p136 = scmp.eq.s32.totalorder %s135, 0
    %s138 = sadd.s32 %s137, 1
    %s139 = scalar_select %p136, %s137, %s138
    %p142 = pneg %p136
    %p143 = scmp.eq.s32.totalorder %s12, 1
    %p144 = por %p142, %p143
    %p145 = scmp.ne.s32.totalorder %s137, %s140
    %p146 = scmp.eq.s32.totalorder %s12, 0
    %p147 = por %p145, %p146
    %p148 = scmp.ne.s32.totalorder %s137, %s140
    %p149 = scmp.eq.s32.totalorder %s17, 1
    %p150 = por %p148, %p149
    %p151 = scmp.ne.s32.totalorder %s140, %s141
    %p152 = scmp.eq.s32.totalorder %s17, 0
    %p153 = por %p151, %p152
    %p154 = scmp.ne.s32.totalorder %s140, %s141
    %p155 = scmp.eq.s32.totalorder %s18, 1
    %p156 = por %p154, %p155
    %p158 = scmp.ne.s32.totalorder %s141, %s157
    %p159 = scmp.eq.s32.totalorder %s18, 0
    %p160 = por %p158, %p159
    %p161 = scmp.le.s32.totalorder 1, %s12
    %p162 = scmp.lt.s32.totalorder %s12, 3
    %p163 = pnand %p161, %p162
    %p164 = pneg %p163
    // Predicated region
    $region9: #{tpu_custom_call.1} parent=5 // pred_check
      _
    $region10: #{tpu_custom_call.1} parent=5 // pred_check_branch
      %166 = sbr.rel (%p163) target = $region12
    $region11: #{tpu_custom_call.1} parent=5 // pred_region
      %s167 = ssub.s32 %s12, 1
      // Predicated region
      $region13: #{tpu_custom_call.1} parent=11 // pred_check
        %p168 = pneg %p59
      $region14: #{tpu_custom_call.1} parent=11 // pred_check_branch
        %170 = sbr.rel (%p168) target = $region16
      $region15: #{tpu_custom_call.1} parent=11 // pred_region
        _
      $region16: #{tpu_custom_call.1} parent=11 // pred_fallthru
        _
      // Predicated region
      $region17: #{tpu_custom_call.1} parent=11 // pred_check
        %p171 = pneg %p80
      $region18: #{tpu_custom_call.1} parent=11 // pred_check_branch
        %173 = sbr.rel (%p171) target = $region20
      $region19: #{tpu_custom_call.1} parent=11 // pred_region
        _
      $region20: #{tpu_custom_call.1} parent=11 // pred_fallthru
        _
      // Predicated region
      $region21: #{tpu_custom_call.1} parent=11 // pred_check
        %p174 = pneg %p101
      $region22: #{tpu_custom_call.1} parent=11 // pred_check_branch
        %176 = sbr.rel (%p174) target = $region24
      $region23: #{tpu_custom_call.1} parent=11 // pred_region
        _
      $region24: #{tpu_custom_call.1} parent=11 // pred_fallthru
        _
    $region12: #{tpu_custom_call.1} parent=5 // pred_fallthru
      _
    %p177 = scmp.lt.s32.totalorder %s12, 2
    // Predicated region
    $region25: #{tpu_custom_call.1} parent=5 // pred_check
      %p178 = pneg %p177
    $region26: #{tpu_custom_call.1} parent=5 // pred_check_branch
      %180 = sbr.rel (%p178) target = $region28
    $region27: #{tpu_custom_call.1} parent=5 // pred_region
      // Predicated region
      $region29: #{tpu_custom_call.1} parent=27 // pred_check
        %p181 = pneg %p32
      $region30: #{tpu_custom_call.1} parent=27 // pred_check_branch
        %183 = sbr.rel (%p181) target = $region32
      $region31: #{tpu_custom_call.1} parent=27 // pred_region
        %s184 = smul.u32 16, %s12
        %p185 = scmp.lt.s32.totalorder %s184, 31
        %s186 = scalar_select %p185, %s184, 31
        %s187 = smul.addr %s186, 8
        %s188 = scalar_lea.vmem %s0, %s187
        %s189 = smul.u32 16, %s12
      $region32: #{tpu_custom_call.1} parent=27 // pred_fallthru
        _
    $region28: #{tpu_custom_call.1} parent=5 // pred_fallthru
      _
    %p190 = scmp.le.s32.totalorder 1, %s12
    %p191 = scmp.lt.s32.totalorder %s12, 3
    %p192 = pnand %p190, %p191
    %p193 = pneg %p192
    // Predicated region
    $region33: #{tpu_custom_call.1} parent=5 // pred_check
      _
    $region34: #{tpu_custom_call.1} parent=5 // pred_check_branch
      %195 = sbr.rel (%p192) target = $region36
    $region35: #{tpu_custom_call.1} parent=5 // pred_region
      %s196 = ssub.s32 %s12, 1
      %s197 = smul.u32 16, %s17
      %p198 = scmp.lt.s32.totalorder %s197, 31
      %s199 = scalar_select %p198, %s197, 31
      %s200 = smul.addr %s199, 8
      %s201 = scalar_lea.vmem %s0, %s200
      %p202 = pneg %p38
      %p203 = pneg %p35
      %p204 = pneg %p59
      %p205 = pneg %p56
      %p206 = pneg %p80
      %p207 = pneg %p77
      %p208 = pneg %p101
      %p209 = pneg %p98
      %p210 = pneg %p127
      %p211 = pneg %p124
      %s212 = smul.u32 16, %s17
      %p213 = scmp.lt.s32.totalorder %s212, 31
      %s214 = scalar_select %p213, %s212, 31
      %s215 = smul.addr %s214, 8
      %s216 = scalar_lea.vmem %s4, %s215
      %p217 = pneg %p153
      %p218 = pneg %p150
      %s219 = smul.u32 16, %s17
      %p220 = scmp.lt.s32.totalorder %s219, 31
      %s221 = scalar_select %p220, %s219, 31
      %s222 = smul.addr %s221, 8
      %s223 = scalar_lea.vmem %s5, %s222
      %s224 = smul.u32 16, %s17
      %p225 = scmp.lt.s32.totalorder %s224, 31
      %s226 = scalar_select %p225, %s224, 31
      %s227 = smul.addr %s226, 8
      %s228 = scalar_lea.vmem %s0, %s227
      %s229 = smul.u32 16, %s17
      %s230 = smul.u32 16, %s17
      %p231 = scmp.lt.s32.totalorder %s230, 31
      %s232 = scalar_select %p231, %s230, 31
      %s233 = smul.addr %s232, 8
      %s234 = scalar_lea.vmem %s4, %s233
      %s235 = smul.u32 16, %s17
      %s236 = smul.u32 16, %s17
      %p237 = scmp.lt.s32.totalorder %s236, 31
      %s238 = scalar_select %p237, %s236, 31
      %s239 = smul.addr %s238, 8
      %s240 = scalar_lea.vmem %s5, %s239
      %s241 = smul.u32 16, %s17
      %v242 = vld [vmem:[%s228] sm:$0xff]
      %v243 = vld [vmem:[%s228 + $0x8] sm:$0xff]
      %v244 = vld [vmem:[%s228 + $0x10] sm:$0xff]
      %v245 = vld [vmem:[%s228 + $0x18] sm:$0xff]
      %v246 = vld [vmem:[%s228 + $0x20] sm:$0xff]
      %v247 = vld [vmem:[%s228 + $0x28] sm:$0xff]
      %v248 = vld [vmem:[%s228 + $0x30] sm:$0xff]
      %v249 = vld [vmem:[%s228 + $0x38] sm:$0xff]
      %v250 = vld [vmem:[%s228 + $0x40] sm:$0xff]
      %v251 = vld [vmem:[%s228 + $0x48] sm:$0xff]
      %v252 = vld [vmem:[%s228 + $0x50] sm:$0xff]
      %v253 = vld [vmem:[%s228 + $0x58] sm:$0xff]
      %v254 = vld [vmem:[%s228 + $0x60] sm:$0xff]
      %v255 = vld [vmem:[%s228 + $0x68] sm:$0xff]
      %v256 = vld [vmem:[%s228 + $0x70] sm:$0xff]
      %v257 = vld [vmem:[%s228 + $0x78] sm:$0xff]
      %vm258 = vcmask 80896
      %v259 = vsel %vm258, %v242, 0.0
      %v260 = vsel %vm258, %v243, 0.0
      %v261 = vsel %vm258, %v244, 0.0
      %v262 = vsel %vm258, %v245, 0.0
      %v263 = vsel %vm258, %v246, 0.0
      %v264 = vsel %vm258, %v247, 0.0
      %v265 = vsel %vm258, %v248, 0.0
      %v266 = vsel %vm258, %v249, 0.0
      %v267 = vsel %vm258, %v250, 0.0
      %v268 = vsel %vm258, %v251, 0.0
      %v269 = vsel %vm258, %v252, 0.0
      %v270 = vsel %vm258, %v253, 0.0
      %v271 = vsel %vm258, %v254, 0.0
      %v272 = vsel %vm258, %v255, 0.0
      %v273 = vsel %vm258, %v256, 0.0
      %v274 = vsel %vm258, %v257, 0.0
      %v275 = vld [vmem:[%s3] sm:$0x7]
      %v276 = vld [vmem:[%s1] sm:$0xff]
      %v277 = vld [vmem:[%s1 + $0x8] sm:$0xff]
      %v278 = vlaneseq
      %v279 = vshrl.u32 %v278, 7
      %v280 = vsub.s32 0, %v279
      %v281 = vrot.slane %v275, %v280
      %vm282 = vcmask 130048
      %v284 = vsel %vm282, %v259, 0
      %v287 = vsel %vm282, %v260, 0
      %v290 = vsel %vm282, %v261, 0
      %v293 = vsel %vm282, %v262, 0
      %v296 = vsel %vm282, %v263, 0
      %v299 = vsel %vm282, %v264, 0
      %v302 = vsel %vm282, %v265, 0
      %v305 = vsel %vm282, %v266, 0
      %v308 = vsel %vm282, %v267, 0
      %v311 = vsel %vm282, %v268, 0
      %v314 = vsel %vm282, %v269, 0
      %v317 = vsel %vm282, %v270, 0
      %v320 = vsel %vm282, %v271, 0
      %v323 = vsel %vm282, %v272, 0
      %v326 = vsel %vm282, %v273, 0
      %v329 = vsel %vm282, %v274, 0
      %331 = vmatprep.subr.mxu0 0.0
      %332 = vmatpush1.msra.mxu0 0.0
      %333 = vmatprep.subr.mxu0 0.0
      %334 = vmatpush1.msra.mxu0 0.0
      %335 = vmatprep.subr.mxu0 0.0
      %336 = vmatpush1.msra.mxu0 0.0
      %337 = vmatprep.subr.mxu0 0.0
      %338 = vmatpush1.msra.mxu0 0.0
      %339 = vmatprep.subr.mxu0 0.0
      %340 = vmatpush1.msra.mxu0 0.0
      %341 = vmatprep.subr.mxu0 0.0
      %342 = vmatpush1.msra.mxu0 0.0
      %343 = vmatprep.subr.mxu0 0.0
      %344 = vmatpush1.msra.mxu0 0.0
      %345 = vmatprep.subr.mxu0 0.0
      %346 = vmatpush1.msra.mxu0 0.0
      %347 = vmatprep.subr.mxu0 0.0
      %348 = vmatpush1.msra.mxu0 0.0
      %349 = vmatprep.subr.mxu0 0.0
      %350 = vmatpush1.msra.mxu0 0.0
      %351 = vmatprep.subr.mxu0 0.0
      %352 = vmatpush1.msra.mxu0 0.0
      %353 = vmatprep.subr.mxu0 0.0
      %354 = vmatpush1.msra.mxu0 0.0
      %355 = vmatprep.subr.mxu0 0.0
      %356 = vmatpush1.msra.mxu0 0.0
      %357 = vmatprep.subr.mxu0 0.0
      %358 = vmatpush1.msra.mxu0 0.0
      %359 = vmatprep.subr.mxu0 0.0
      %360 = vmatpush1.msra.mxu0 %v277
      %361 = vmatprep.subr.mxu0 0.0
      %362 = vmatpush1.msra.mxu0 %v276
      %363 = vmatprep.subr.mxu0 0.0
      %364 = vmatpush2.msra.mxu0 0.0
      %365 = vmatprep.subr.mxu0 0.0
      %366 = vmatpush2.msra.mxu0 0.0
      %367 = vmatprep.subr.mxu0 0.0
      %368 = vmatpush2.msra.mxu0 0.0
      %369 = vmatprep.subr.mxu0 0.0
      %370 = vmatpush2.msra.mxu0 0.0
      %371 = vmatprep.subr.mxu0 0.0
      %372 = vmatpush2.msra.mxu0 0.0
      %373 = vmatprep.subr.mxu0 0.0
      %374 = vmatpush2.msra.mxu0 0.0
      %375 = vmatprep.subr.mxu0 0.0
      %376 = vmatpush2.msra.mxu0 0.0
      %377 = vmatprep.subr.mxu0 0.0
      %378 = vmatpush2.msra.mxu0 0.0
      %379 = vmatprep.subr.mxu0 0.0
      %380 = vmatpush2.msra.mxu0 0.0
      %381 = vmatprep.subr.mxu0 0.0
      %382 = vmatpush2.msra.mxu0 0.0
      %383 = vmatprep.subr.mxu0 0.0
      %384 = vmatpush2.msra.mxu0 0.0
      %385 = vmatprep.subr.mxu0 0.0
      %386 = vmatpush2.msra.mxu0 0.0
      %387 = vmatprep.subr.mxu0 0.0
      %388 = vmatpush2.msra.mxu0 0.0
      %389 = vmatprep.subr.mxu0 0.0
      %390 = vmatpush2.msra.mxu0 0.0
      %391 = vmatprep.subr.mxu0 0.0
      %392 = vmatpush2.msra.mxu0 0.0
      %393 = vmatprep.subr.mxu0 0.0
      %394 = vmatpush2.msra.mxu0 0.0
      %395 = vmatprep.mubr.f32.mxu0 0.0
      %396 = vmatmul.mubr.f32.gmra.mxu0 %v284
      %v397 = vpop.f32.mrf.mxu0
      %v398 = vadd.f32 %v281, %v397
      %v399 = vpop.f32.mrf.mxu0
      %400 = vmatprep.mubr.f32.mxu0 0.0
      %401 = vmatmul.mubr.f32.gmra.mxu0 %v287
      %v402 = vpop.f32.mrf.mxu0
      %v403 = vadd.f32 %v281, %v402
      %v404 = vpop.f32.mrf.mxu0
      %405 = vmatprep.mubr.f32.mxu0 0.0
      %406 = vmatmul.mubr.f32.gmra.mxu0 %v290
      %v407 = vpop.f32.mrf.mxu0
      %v408 = vadd.f32 %v281, %v407
      %v409 = vpop.f32.mrf.mxu0
      %410 = vmatprep.mubr.f32.mxu0 0.0
      %411 = vmatmul.mubr.f32.gmra.mxu0 %v293
      %v412 = vpop.f32.mrf.mxu0
      %v413 = vadd.f32 %v281, %v412
      %v414 = vpop.f32.mrf.mxu0
      %415 = vmatprep.mubr.f32.mxu0 0.0
      %416 = vmatmul.mubr.f32.gmra.mxu0 %v296
      %v417 = vpop.f32.mrf.mxu0
      %v418 = vadd.f32 %v281, %v417
      %v419 = vpop.f32.mrf.mxu0
      %420 = vmatprep.mubr.f32.mxu0 0.0
      %421 = vmatmul.mubr.f32.gmra.mxu0 %v299
      %v422 = vpop.f32.mrf.mxu0
      %v423 = vadd.f32 %v281, %v422
      %v424 = vpop.f32.mrf.mxu0
      %425 = vmatprep.mubr.f32.mxu0 0.0
      %426 = vmatmul.mubr.f32.gmra.mxu0 %v302
      %v427 = vpop.f32.mrf.mxu0
      %v428 = vadd.f32 %v281, %v427
      %v429 = vpop.f32.mrf.mxu0
      %430 = vmatprep.mubr.f32.mxu0 0.0
      %431 = vmatmul.mubr.f32.gmra.mxu0 %v305
      %v432 = vpop.f32.mrf.mxu0
      %v433 = vadd.f32 %v281, %v432
      %v434 = vpop.f32.mrf.mxu0
      %435 = vmatprep.mubr.f32.mxu0 0.0
      %436 = vmatmul.mubr.f32.gmra.mxu0 %v308
      %v437 = vpop.f32.mrf.mxu0
      %v438 = vadd.f32 %v281, %v437
      %v439 = vpop.f32.mrf.mxu0
      %440 = vmatprep.mubr.f32.mxu0 0.0
      %441 = vmatmul.mubr.f32.gmra.mxu0 %v311
      %v442 = vpop.f32.mrf.mxu0
      %v443 = vadd.f32 %v281, %v442
      %v444 = vpop.f32.mrf.mxu0
      %445 = vmatprep.mubr.f32.mxu0 0.0
      %446 = vmatmul.mubr.f32.gmra.mxu0 %v314
      %v447 = vpop.f32.mrf.mxu0
      %v448 = vadd.f32 %v281, %v447
      %v449 = vpop.f32.mrf.mxu0
      %450 = vmatprep.mubr.f32.mxu0 0.0
      %451 = vmatmul.mubr.f32.gmra.mxu0 %v317
      %v452 = vpop.f32.mrf.mxu0
      %v453 = vadd.f32 %v281, %v452
      %v454 = vpop.f32.mrf.mxu0
      %455 = vmatprep.mubr.f32.mxu0 0.0
      %456 = vmatmul.mubr.f32.gmra.mxu0 %v320
      %v457 = vpop.f32.mrf.mxu0
      %v458 = vadd.f32 %v281, %v457
      %v459 = vpop.f32.mrf.mxu0
      %460 = vmatprep.mubr.f32.mxu0 0.0
      %461 = vmatmul.mubr.f32.gmra.mxu0 %v323
      %v462 = vpop.f32.mrf.mxu0
      %v463 = vadd.f32 %v281, %v462
      %v464 = vpop.f32.mrf.mxu0
      %465 = vmatprep.mubr.f32.mxu0 0.0
      %466 = vmatmul.mubr.f32.gmra.mxu0 %v326
      %v467 = vpop.f32.mrf.mxu0
      %v468 = vadd.f32 %v281, %v467
      %v469 = vpop.f32.mrf.mxu0
      %470 = vmatprep.mubr.f32.mxu0 0.0
      %471 = vmatmul.mubr.f32.gmra.mxu0 %v329
      %v472 = vpop.f32.mrf.mxu0
      %v473 = vadd.f32 %v281, %v472
      %v474 = vpop.f32.mrf.mxu0
      %475 = vdwg.mxu0
      %v476 = vmax.f32 %v398, 0.0
      %v477 = vmax.f32 %v403, 0.0
      %v478 = vmax.f32 %v408, 0.0
      %v479 = vmax.f32 %v413, 0.0
      %v480 = vmax.f32 %v418, 0.0
      %v481 = vmax.f32 %v423, 0.0
      %v482 = vmax.f32 %v428, 0.0
      %v483 = vmax.f32 %v433, 0.0
      %v484 = vmax.f32 %v438, 0.0
      %v485 = vmax.f32 %v443, 0.0
      %v486 = vmax.f32 %v448, 0.0
      %v487 = vmax.f32 %v453, 0.0
      %v488 = vmax.f32 %v458, 0.0
      %v489 = vmax.f32 %v463, 0.0
      %v490 = vmax.f32 %v468, 0.0
      %v491 = vmax.f32 %v473, 0.0
      %v492 = vld [vmem:[%s2] sm:$0xff]
      %v493 = vld [vmem:[%s2 + $0x8] sm:$0xff]
      %v494 = vld [vmem:[%s2 + $0x10] sm:$0xff]
      %v495 = vld [vmem:[%s2 + $0x18] sm:$0xff]
      %v496 = vld [vmem:[%s2 + $0x20] sm:$0xff]
      %v497 = vld [vmem:[%s2 + $0x28] sm:$0xff]
      %v498 = vld [vmem:[%s2 + $0x30] sm:$0xff]
      %v499 = vld [vmem:[%s2 + $0x38] sm:$0xff]
      %v500 = vld [vmem:[%s2 + $0x40] sm:$0xff]
      %v501 = vld [vmem:[%s2 + $0x48] sm:$0xff]
      %v502 = vld [vmem:[%s2 + $0x50] sm:$0xff]
      %v503 = vld [vmem:[%s2 + $0x58] sm:$0xff]
      %v504 = vld [vmem:[%s2 + $0x60] sm:$0xff]
      %v505 = vld [vmem:[%s2 + $0x68] sm:$0xff]
      %v506 = vld [vmem:[%s2 + $0x70] sm:$0xff]
      %v507 = vld [vmem:[%s2 + $0x78] sm:$0xff]
      %v508 = vlaneseq
      %v509 = vshrl.u32 %v508, 7
      %v510 = vsub.s32 1, %v509
      %v511 = vrot.slane %v275, %v510
      %512 = vmatprep.subr.mxu0 0.0
      %513 = vmatpush1.msra.mxu0 %v507
      %514 = vmatprep.subr.mxu0 0.0
      %515 = vmatpush1.msra.mxu0 %v506
      %516 = vmatprep.subr.mxu0 0.0
      %517 = vmatpush1.msra.mxu0 %v505
      %518 = vmatprep.subr.mxu0 0.0
      %519 = vmatpush1.msra.mxu0 %v504
      %520 = vmatprep.subr.mxu0 0.0
      %521 = vmatpush1.msra.mxu0 %v503
      %522 = vmatprep.subr.mxu0 0.0
      %523 = vmatpush1.msra.mxu0 %v502
      %524 = vmatprep.subr.mxu0 0.0
      %525 = vmatpush1.msra.mxu0 %v501
      %526 = vmatprep.subr.mxu0 0.0
      %527 = vmatpush1.msra.mxu0 %v500
      %528 = vmatprep.subr.mxu0 0.0
      %529 = vmatpush1.msra.mxu0 %v499
      %530 = vmatprep.subr.mxu0 0.0
      %531 = vmatpush1.msra.mxu0 %v498
      %532 = vmatprep.subr.mxu0 0.0
      %533 = vmatpush1.msra.mxu0 %v497
      %534 = vmatprep.subr.mxu0 0.0
      %535 = vmatpush1.msra.mxu0 %v496
      %536 = vmatprep.subr.mxu0 0.0
      %537 = vmatpush1.msra.mxu0 %v495
      %538 = vmatprep.subr.mxu0 0.0
      %539 = vmatpush1.msra.mxu0 %v494
      %540 = vmatprep.subr.mxu0 0.0
      %541 = vmatpush1.msra.mxu0 %v493
      %542 = vmatprep.subr.mxu0 0.0
      %543 = vmatpush1.msra.mxu0 %v492
      %544 = vmatprep.subr.mxu0 0.0
      %545 = vmatpush2.msra.mxu0 0.0
      %546 = vmatprep.subr.mxu0 0.0
      %547 = vmatpush2.msra.mxu0 0.0
      %548 = vmatprep.subr.mxu0 0.0
      %549 = vmatpush2.msra.mxu0 0.0
      %550 = vmatprep.subr.mxu0 0.0
      %551 = vmatpush2.msra.mxu0 0.0
      %552 = vmatprep.subr.mxu0 0.0
      %553 = vmatpush2.msra.mxu0 0.0
      %554 = vmatprep.subr.mxu0 0.0
      %555 = vmatpush2.msra.mxu0 0.0
      %556 = vmatprep.subr.mxu0 0.0
      %557 = vmatpush2.msra.mxu0 0.0
      %558 = vmatprep.subr.mxu0 0.0
      %559 = vmatpush2.msra.mxu0 0.0
      %560 = vmatprep.subr.mxu0 0.0
      %561 = vmatpush2.msra.mxu0 0.0
      %562 = vmatprep.subr.mxu0 0.0
      %563 = vmatpush2.msra.mxu0 0.0
      %564 = vmatprep.subr.mxu0 0.0
      %565 = vmatpush2.msra.mxu0 0.0
      %566 = vmatprep.subr.mxu0 0.0
      %567 = vmatpush2.msra.mxu0 0.0
      %568 = vmatprep.subr.mxu0 0.0
      %569 = vmatpush2.msra.mxu0 0.0
      %570 = vmatprep.subr.mxu0 0.0
      %571 = vmatpush2.msra.mxu0 0.0
      %572 = vmatprep.subr.mxu0 0.0
      %573 = vmatpush2.msra.mxu0 0.0
      %574 = vmatprep.subr.mxu0 0.0
      %575 = vmatpush2.msra.mxu0 0.0
      %576 = vmatprep.mubr.f32.mxu0 0.0
      %577 = vmatmul.mubr.f32.gmra.mxu0 %v476
      %v578 = vpop.f32.mrf.mxu0
      %v579 = vadd.f32 %v511, %v578
      %v580 = vpop.f32.mrf.mxu0
      %581 = vmatprep.mubr.f32.mxu0 0.0
      %582 = vmatmul.mubr.f32.gmra.mxu0 %v477
      %v583 = vpop.f32.mrf.mxu0
      %v584 = vadd.f32 %v511, %v583
      %v585 = vpop.f32.mrf.mxu0
      %586 = vmatprep.mubr.f32.mxu0 0.0
      %587 = vmatmul.mubr.f32.gmra.mxu0 %v478
      %v588 = vpop.f32.mrf.mxu0
      %v589 = vadd.f32 %v511, %v588
      %v590 = vpop.f32.mrf.mxu0
      %591 = vmatprep.mubr.f32.mxu0 0.0
      %592 = vmatmul.mubr.f32.gmra.mxu0 %v479
      %v593 = vpop.f32.mrf.mxu0
      %v594 = vadd.f32 %v511, %v593
      %v595 = vpop.f32.mrf.mxu0
      %596 = vmatprep.mubr.f32.mxu0 0.0
      %597 = vmatmul.mubr.f32.gmra.mxu0 %v480
      %v598 = vpop.f32.mrf.mxu0
      %v599 = vadd.f32 %v511, %v598
      %v600 = vpop.f32.mrf.mxu0
      %601 = vmatprep.mubr.f32.mxu0 0.0
      %602 = vmatmul.mubr.f32.gmra.mxu0 %v481
      %v603 = vpop.f32.mrf.mxu0
      %v604 = vadd.f32 %v511, %v603
      %v605 = vpop.f32.mrf.mxu0
      %606 = vmatprep.mubr.f32.mxu0 0.0
      %607 = vmatmul.mubr.f32.gmra.mxu0 %v482
      %v608 = vpop.f32.mrf.mxu0
      %v609 = vadd.f32 %v511, %v608
      %v610 = vpop.f32.mrf.mxu0
      %611 = vmatprep.mubr.f32.mxu0 0.0
      %612 = vmatmul.mubr.f32.gmra.mxu0 %v483
      %v613 = vpop.f32.mrf.mxu0
      %v614 = vadd.f32 %v511, %v613
      %v615 = vpop.f32.mrf.mxu0
      %616 = vmatprep.mubr.f32.mxu0 0.0
      %617 = vmatmul.mubr.f32.gmra.mxu0 %v484
      %v618 = vpop.f32.mrf.mxu0
      %v619 = vadd.f32 %v511, %v618
      %v620 = vpop.f32.mrf.mxu0
      %621 = vmatprep.mubr.f32.mxu0 0.0
      %622 = vmatmul.mubr.f32.gmra.mxu0 %v485
      %v623 = vpop.f32.mrf.mxu0
      %v624 = vadd.f32 %v511, %v623
      %v625 = vpop.f32.mrf.mxu0
      %626 = vmatprep.mubr.f32.mxu0 0.0
      %627 = vmatmul.mubr.f32.gmra.mxu0 %v486
      %v628 = vpop.f32.mrf.mxu0
      %v629 = vadd.f32 %v511, %v628
      %v630 = vpop.f32.mrf.mxu0
      %631 = vmatprep.mubr.f32.mxu0 0.0
      %632 = vmatmul.mubr.f32.gmra.mxu0 %v487
      %v633 = vpop.f32.mrf.mxu0
      %v634 = vadd.f32 %v511, %v633
      %v635 = vpop.f32.mrf.mxu0
      %636 = vmatprep.mubr.f32.mxu0 0.0
      %637 = vmatmul.mubr.f32.gmra.mxu0 %v488
      %v638 = vpop.f32.mrf.mxu0
      %v639 = vadd.f32 %v511, %v638
      %v640 = vpop.f32.mrf.mxu0
      %641 = vmatprep.mubr.f32.mxu0 0.0
      %642 = vmatmul.mubr.f32.gmra.mxu0 %v489
      %v643 = vpop.f32.mrf.mxu0
      %v644 = vadd.f32 %v511, %v643
      %v645 = vpop.f32.mrf.mxu0
      %646 = vmatprep.mubr.f32.mxu0 0.0
      %647 = vmatmul.mubr.f32.gmra.mxu0 %v490
      %v648 = vpop.f32.mrf.mxu0
      %v649 = vadd.f32 %v511, %v648
      %v650 = vpop.f32.mrf.mxu0
      %651 = vmatprep.mubr.f32.mxu0 0.0
      %652 = vmatmul.mubr.f32.gmra.mxu0 %v491
      %v653 = vpop.f32.mrf.mxu0
      %v654 = vadd.f32 %v511, %v653
      %v655 = vpop.f32.mrf.mxu0
      %656 = vdwg.mxu0
      %v657 = vmax.f32 %v579, 0.0
      %v658 = vmax.f32 %v584, 0.0
      %v659 = vmax.f32 %v589, 0.0
      %v660 = vmax.f32 %v594, 0.0
      %v661 = vmax.f32 %v599, 0.0
      %v662 = vmax.f32 %v604, 0.0
      %v663 = vmax.f32 %v609, 0.0
      %v664 = vmax.f32 %v614, 0.0
      %v665 = vmax.f32 %v619, 0.0
      %v666 = vmax.f32 %v624, 0.0
      %v667 = vmax.f32 %v629, 0.0
      %v668 = vmax.f32 %v634, 0.0
      %v669 = vmax.f32 %v639, 0.0
      %v670 = vmax.f32 %v644, 0.0
      %v671 = vmax.f32 %v649, 0.0
      %v672 = vmax.f32 %v654, 0.0
      %s673 = scalar_lea.vmem %s2, 128
      %v674 = vld [vmem:[%s673] sm:$0xff]
      %v675 = vld [vmem:[%s673 + $0x8] sm:$0xff]
      %v676 = vld [vmem:[%s673 + $0x10] sm:$0xff]
      %v677 = vld [vmem:[%s673 + $0x18] sm:$0xff]
      %v678 = vld [vmem:[%s673 + $0x20] sm:$0xff]
      %v679 = vld [vmem:[%s673 + $0x28] sm:$0xff]
      %v680 = vld [vmem:[%s673 + $0x30] sm:$0xff]
      %v681 = vld [vmem:[%s673 + $0x38] sm:$0xff]
      %v682 = vld [vmem:[%s673 + $0x40] sm:$0xff]
      %v683 = vld [vmem:[%s673 + $0x48] sm:$0xff]
      %v684 = vld [vmem:[%s673 + $0x50] sm:$0xff]
      %v685 = vld [vmem:[%s673 + $0x58] sm:$0xff]
      %v686 = vld [vmem:[%s673 + $0x60] sm:$0xff]
      %v687 = vld [vmem:[%s673 + $0x68] sm:$0xff]
      %v688 = vld [vmem:[%s673 + $0x70] sm:$0xff]
      %v689 = vld [vmem:[%s673 + $0x78] sm:$0xff]
      %v690 = vlaneseq
      %v691 = vshrl.u32 %v690, 7
      %v692 = vsub.s32 2, %v691
      %v693 = vrot.slane %v275, %v692
      %694 = vmatprep.subr.mxu0 0.0
      %695 = vmatpush1.msra.mxu0 %v689
      %696 = vmatprep.subr.mxu0 0.0
      %697 = vmatpush1.msra.mxu0 %v688
      %698 = vmatprep.subr.mxu0 0.0
      %699 = vmatpush1.msra.mxu0 %v687
      %700 = vmatprep.subr.mxu0 0.0
      %701 = vmatpush1.msra.mxu0 %v686
      %702 = vmatprep.subr.mxu0 0.0
      %703 = vmatpush1.msra.mxu0 %v685
      %704 = vmatprep.subr.mxu0 0.0
      %705 = vmatpush1.msra.mxu0 %v684
      %706 = vmatprep.subr.mxu0 0.0
      %707 = vmatpush1.msra.mxu0 %v683
      %708 = vmatprep.subr.mxu0 0.0
      %709 = vmatpush1.msra.mxu0 %v682
      %710 = vmatprep.subr.mxu0 0.0
      %711 = vmatpush1.msra.mxu0 %v681
      %712 = vmatprep.subr.mxu0 0.0
      %713 = vmatpush1.msra.mxu0 %v680
      %714 = vmatprep.subr.mxu0 0.0
      %715 = vmatpush1.msra.mxu0 %v679
      %716 = vmatprep.subr.mxu0 0.0
      %717 = vmatpush1.msra.mxu0 %v678
      %718 = vmatprep.subr.mxu0 0.0
      %719 = vmatpush1.msra.mxu0 %v677
      %720 = vmatprep.subr.mxu0 0.0
      %721 = vmatpush1.msra.mxu0 %v676
      %722 = vmatprep.subr.mxu0 0.0
      %723 = vmatpush1.msra.mxu0 %v675
      %724 = vmatprep.subr.mxu0 0.0
      %725 = vmatpush1.msra.mxu0 %v674
      %726 = vmatprep.subr.mxu0 0.0
      %727 = vmatpush2.msra.mxu0 0.0
      %728 = vmatprep.subr.mxu0 0.0
      %729 = vmatpush2.msra.mxu0 0.0
      %730 = vmatprep.subr.mxu0 0.0
      %731 = vmatpush2.msra.mxu0 0.0
      %732 = vmatprep.subr.mxu0 0.0
      %733 = vmatpush2.msra.mxu0 0.0
      %734 = vmatprep.subr.mxu0 0.0
      %735 = vmatpush2.msra.mxu0 0.0
      %736 = vmatprep.subr.mxu0 0.0
      %737 = vmatpush2.msra.mxu0 0.0
      %738 = vmatprep.subr.mxu0 0.0
      %739 = vmatpush2.msra.mxu0 0.0
      %740 = vmatprep.subr.mxu0 0.0
      %741 = vmatpush2.msra.mxu0 0.0
      %742 = vmatprep.subr.mxu0 0.0
      %743 = vmatpush2.msra.mxu0 0.0
      %744 = vmatprep.subr.mxu0 0.0
      %745 = vmatpush2.msra.mxu0 0.0
      %746 = vmatprep.subr.mxu0 0.0
      %747 = vmatpush2.msra.mxu0 0.0
      %748 = vmatprep.subr.mxu0 0.0
      %749 = vmatpush2.msra.mxu0 0.0
      %750 = vmatprep.subr.mxu0 0.0
      %751 = vmatpush2.msra.mxu0 0.0
      %752 = vmatprep.subr.mxu0 0.0
      %753 = vmatpush2.msra.mxu0 0.0
      %754 = vmatprep.subr.mxu0 0.0
      %755 = vmatpush2.msra.mxu0 0.0
      %756 = vmatprep.subr.mxu0 0.0
      %757 = vmatpush2.msra.mxu0 0.0
      %758 = vmatprep.mubr.f32.mxu0 0.0
      %759 = vmatmul.mubr.f32.gmra.mxu0 %v657
      %v760 = vpop.f32.mrf.mxu0
      %v761 = vadd.f32 %v693, %v760
      %v762 = vpop.f32.mrf.mxu0
      %763 = vmatprep.mubr.f32.mxu0 0.0
      %764 = vmatmul.mubr.f32.gmra.mxu0 %v658
      %v765 = vpop.f32.mrf.mxu0
      %v766 = vadd.f32 %v693, %v765
      %v767 = vpop.f32.mrf.mxu0
      %768 = vmatprep.mubr.f32.mxu0 0.0
      %769 = vmatmul.mubr.f32.gmra.mxu0 %v659
      %v770 = vpop.f32.mrf.mxu0
      %v771 = vadd.f32 %v693, %v770
      %v772 = vpop.f32.mrf.mxu0
      %773 = vmatprep.mubr.f32.mxu0 0.0
      %774 = vmatmul.mubr.f32.gmra.mxu0 %v660
      %v775 = vpop.f32.mrf.mxu0
      %v776 = vadd.f32 %v693, %v775
      %v777 = vpop.f32.mrf.mxu0
      %778 = vmatprep.mubr.f32.mxu0 0.0
      %779 = vmatmul.mubr.f32.gmra.mxu0 %v661
      %v780 = vpop.f32.mrf.mxu0
      %v781 = vadd.f32 %v693, %v780
      %v782 = vpop.f32.mrf.mxu0
      %783 = vmatprep.mubr.f32.mxu0 0.0
      %784 = vmatmul.mubr.f32.gmra.mxu0 %v662
      %v785 = vpop.f32.mrf.mxu0
      %v786 = vadd.f32 %v693, %v785
      %v787 = vpop.f32.mrf.mxu0
      %788 = vmatprep.mubr.f32.mxu0 0.0
      %789 = vmatmul.mubr.f32.gmra.mxu0 %v663
      %v790 = vpop.f32.mrf.mxu0
      %v791 = vadd.f32 %v693, %v790
      %v792 = vpop.f32.mrf.mxu0
      %793 = vmatprep.mubr.f32.mxu0 0.0
      %794 = vmatmul.mubr.f32.gmra.mxu0 %v664
      %v795 = vpop.f32.mrf.mxu0
      %v796 = vadd.f32 %v693, %v795
      %v797 = vpop.f32.mrf.mxu0
      %798 = vmatprep.mubr.f32.mxu0 0.0
      %799 = vmatmul.mubr.f32.gmra.mxu0 %v665
      %v800 = vpop.f32.mrf.mxu0
      %v801 = vadd.f32 %v693, %v800
      %v802 = vpop.f32.mrf.mxu0
      %803 = vmatprep.mubr.f32.mxu0 0.0
      %804 = vmatmul.mubr.f32.gmra.mxu0 %v666
      %v805 = vpop.f32.mrf.mxu0
      %v806 = vadd.f32 %v693, %v805
      %v807 = vpop.f32.mrf.mxu0
      %808 = vmatprep.mubr.f32.mxu0 0.0
      %809 = vmatmul.mubr.f32.gmra.mxu0 %v667
      %v810 = vpop.f32.mrf.mxu0
      %v811 = vadd.f32 %v693, %v810
      %v812 = vpop.f32.mrf.mxu0
      %813 = vmatprep.mubr.f32.mxu0 0.0
      %814 = vmatmul.mubr.f32.gmra.mxu0 %v668
      %v815 = vpop.f32.mrf.mxu0
      %v816 = vadd.f32 %v693, %v815
      %v817 = vpop.f32.mrf.mxu0
      %818 = vmatprep.mubr.f32.mxu0 0.0
      %819 = vmatmul.mubr.f32.gmra.mxu0 %v669
      %v820 = vpop.f32.mrf.mxu0
      %v821 = vadd.f32 %v693, %v820
      %v822 = vpop.f32.mrf.mxu0
      %823 = vmatprep.mubr.f32.mxu0 0.0
      %824 = vmatmul.mubr.f32.gmra.mxu0 %v670
      %v825 = vpop.f32.mrf.mxu0
      %v826 = vadd.f32 %v693, %v825
      %v827 = vpop.f32.mrf.mxu0
      %828 = vmatprep.mubr.f32.mxu0 0.0
      %829 = vmatmul.mubr.f32.gmra.mxu0 %v671
      %v830 = vpop.f32.mrf.mxu0
      %v831 = vadd.f32 %v693, %v830
      %v832 = vpop.f32.mrf.mxu0
      %833 = vmatprep.mubr.f32.mxu0 0.0
      %834 = vmatmul.mubr.f32.gmra.mxu0 %v672
      %v835 = vpop.f32.mrf.mxu0
      %v836 = vadd.f32 %v693, %v835
      %v837 = vpop.f32.mrf.mxu0
      %838 = vdwg.mxu0
      %839 = vst.msk [vmem:[%s234] sm:$0xff] %vm258, %v761
      %840 = vst.msk [vmem:[%s234 + $0x8] sm:$0xff] %vm258, %v766
      %841 = vst.msk [vmem:[%s234 + $0x10] sm:$0xff] %vm258, %v771
      %842 = vst.msk [vmem:[%s234 + $0x18] sm:$0xff] %vm258, %v776
      %843 = vst.msk [vmem:[%s234 + $0x20] sm:$0xff] %vm258, %v781
      %844 = vst.msk [vmem:[%s234 + $0x28] sm:$0xff] %vm258, %v786
      %845 = vst.msk [vmem:[%s234 + $0x30] sm:$0xff] %vm258, %v791
      %846 = vst.msk [vmem:[%s234 + $0x38] sm:$0xff] %vm258, %v796
      %847 = vst.msk [vmem:[%s234 + $0x40] sm:$0xff] %vm258, %v801
      %848 = vst.msk [vmem:[%s234 + $0x48] sm:$0xff] %vm258, %v806
      %849 = vst.msk [vmem:[%s234 + $0x50] sm:$0xff] %vm258, %v811
      %850 = vst.msk [vmem:[%s234 + $0x58] sm:$0xff] %vm258, %v816
      %851 = vst.msk [vmem:[%s234 + $0x60] sm:$0xff] %vm258, %v821
      %852 = vst.msk [vmem:[%s234 + $0x68] sm:$0xff] %vm258, %v826
      %853 = vst.msk [vmem:[%s234 + $0x70] sm:$0xff] %vm258, %v831
      %854 = vst.msk [vmem:[%s234 + $0x78] sm:$0xff] %vm258, %v836
      %v855 = vtanh.pop %v761
      %v856 = vtanh.pop %v766
      %v857 = vtanh.pop %v771
      %v858 = vtanh.pop %v776
      %v859 = vtanh.pop %v781
      %v860 = vtanh.pop %v786
      %v861 = vtanh.pop %v791
      %v862 = vtanh.pop %v796
      %v863 = vtanh.pop %v801
      %v864 = vtanh.pop %v806
      %v865 = vtanh.pop %v811
      %v866 = vtanh.pop %v816
      %v867 = vtanh.pop %v821
      %v868 = vtanh.pop %v826
      %v869 = vtanh.pop %v831
      %v870 = vtanh.pop %v836
      %887 = vrot.lane.b32.xlu0 %v855, 118
      %v888 = vpop.permute.xlu0 %887
      %889 = vrot.lane.b32.xlu0 %v856, 118
      %v890 = vpop.permute.xlu0 %889
      %891 = vrot.lane.b32.xlu0 %v857, 118
      %v892 = vpop.permute.xlu0 %891
      %893 = vrot.lane.b32.xlu0 %v858, 118
      %v894 = vpop.permute.xlu0 %893
      %895 = vrot.lane.b32.xlu0 %v859, 118
      %v896 = vpop.permute.xlu0 %895
      %897 = vrot.lane.b32.xlu0 %v860, 118
      %v898 = vpop.permute.xlu0 %897
      %899 = vrot.lane.b32.xlu0 %v861, 118
      %v900 = vpop.permute.xlu0 %899
      %901 = vrot.lane.b32.xlu0 %v862, 118
      %v902 = vpop.permute.xlu0 %901
      %903 = vrot.lane.b32.xlu0 %v863, 118
      %v904 = vpop.permute.xlu0 %903
      %905 = vrot.lane.b32.xlu0 %v864, 118
      %v906 = vpop.permute.xlu0 %905
      %907 = vrot.lane.b32.xlu0 %v865, 118
      %v908 = vpop.permute.xlu0 %907
      %909 = vrot.lane.b32.xlu0 %v866, 118
      %v910 = vpop.permute.xlu0 %909
      %911 = vrot.lane.b32.xlu0 %v867, 118
      %v912 = vpop.permute.xlu0 %911
      %913 = vrot.lane.b32.xlu0 %v868, 118
      %v914 = vpop.permute.xlu0 %913
      %915 = vrot.lane.b32.xlu0 %v869, 118
      %v916 = vpop.permute.xlu0 %915
      %917 = vrot.lane.b32.xlu0 %v870, 118
      %v918 = vpop.permute.xlu0 %917
      %935 = vst.msk [vmem:[%s240] sm:$0xff] %vm258, %v888
      %936 = vst.msk [vmem:[%s240 + $0x8] sm:$0xff] %vm258, %v890
      %937 = vst.msk [vmem:[%s240 + $0x10] sm:$0xff] %vm258, %v892
      %938 = vst.msk [vmem:[%s240 + $0x18] sm:$0xff] %vm258, %v894
      %939 = vst.msk [vmem:[%s240 + $0x20] sm:$0xff] %vm258, %v896
      %940 = vst.msk [vmem:[%s240 + $0x28] sm:$0xff] %vm258, %v898
      %941 = vst.msk [vmem:[%s240 + $0x30] sm:$0xff] %vm258, %v900
      %942 = vst.msk [vmem:[%s240 + $0x38] sm:$0xff] %vm258, %v902
      %943 = vst.msk [vmem:[%s240 + $0x40] sm:$0xff] %vm258, %v904
      %944 = vst.msk [vmem:[%s240 + $0x48] sm:$0xff] %vm258, %v906
      %945 = vst.msk [vmem:[%s240 + $0x50] sm:$0xff] %vm258, %v908
      %946 = vst.msk [vmem:[%s240 + $0x58] sm:$0xff] %vm258, %v910
      %947 = vst.msk [vmem:[%s240 + $0x60] sm:$0xff] %vm258, %v912
      %948 = vst.msk [vmem:[%s240 + $0x68] sm:$0xff] %vm258, %v914
      %949 = vst.msk [vmem:[%s240 + $0x70] sm:$0xff] %vm258, %v916
      %950 = vst.msk [vmem:[%s240 + $0x78] sm:$0xff] %vm258, %v918
      %s951 = smul.u32 16, %s17
      %p952 = scmp.lt.s32.totalorder %s951, 31
      %s953 = scalar_select %p952, %s951, 31
      %s954 = smul.addr %s953, 8
      %s955 = scalar_lea.vmem %s4, %s954
      %s956 = smul.u32 16, %s17
      %p957 = scmp.lt.s32.totalorder %s956, 31
      %s958 = scalar_select %p957, %s956, 31
      %s959 = smul.addr %s958, 8
      %s960 = scalar_lea.vmem %s5, %s959
      // Predicated region
      $region37: #{tpu_custom_call.1} parent=35 // pred_check
        %p961 = pneg %p124
      $region38: #{tpu_custom_call.1} parent=35 // pred_check_branch
        %963 = sbr.rel (%p961) target = $region40
      $region39: #{tpu_custom_call.1} parent=35 // pred_region
        %s964 = smul.u32 16, %s17
      $region40: #{tpu_custom_call.1} parent=35 // pred_fallthru
        _
      // Predicated region
      $region41: #{tpu_custom_call.1} parent=35 // pred_check
        %p965 = pneg %p150
      $region42: #{tpu_custom_call.1} parent=35 // pred_check_branch
        %967 = sbr.rel (%p965) target = $region44
      $region43: #{tpu_custom_call.1} parent=35 // pred_region
        %s968 = smul.u32 16, %s17
      $region44: #{tpu_custom_call.1} parent=35 // pred_fallthru
        _
    $region36: #{tpu_custom_call.1} parent=5 // pred_fallthru
      _
    %p969 = scmp.le.s32.totalorder 2, %s12
    // Predicated region
    $region45: #{tpu_custom_call.1} parent=5 // pred_check
      %p970 = pneg %p969
    $region46: #{tpu_custom_call.1} parent=5 // pred_check_branch
      %972 = sbr.rel (%p970) target = $region48
    $region47: #{tpu_custom_call.1} parent=5 // pred_region
      %s973 = ssub.s32 %s12, 2
      // Predicated region
      $region49: #{tpu_custom_call.1} parent=47 // pred_check
        %p974 = pneg %p130
      $region50: #{tpu_custom_call.1} parent=47 // pred_check_branch
        %976 = sbr.rel (%p974) target = $region52
      $region51: #{tpu_custom_call.1} parent=47 // pred_region
        %s977 = smul.u32 16, %s18
        %p978 = scmp.lt.s32.totalorder %s977, 31
        %s979 = scalar_select %p978, %s977, 31
        %s980 = smul.addr %s979, 8
        %s981 = scalar_lea.vmem %s4, %s980
      $region52: #{tpu_custom_call.1} parent=47 // pred_fallthru
        _
      // Predicated region
      $region53: #{tpu_custom_call.1} parent=47 // pred_check
        %p982 = pneg %p156
      $region54: #{tpu_custom_call.1} parent=47 // pred_check_branch
        %984 = sbr.rel (%p982) target = $region56
      $region55: #{tpu_custom_call.1} parent=47 // pred_region
        %s985 = smul.u32 16, %s18
        %p986 = scmp.lt.s32.totalorder %s985, 31
        %s987 = scalar_select %p986, %s985, 31
        %s988 = smul.addr %s987, 8
        %s989 = scalar_lea.vmem %s5, %s988
      $region56: #{tpu_custom_call.1} parent=47 // pred_fallthru
        _
    $region48: #{tpu_custom_call.1} parent=5 // pred_fallthru
      _
  $region6: #{tpu_custom_call.1} parent=0 // loop_footer
    %s16 = sadd.s32 1, %s12
  $region7: #{tpu_custom_call.1} parent=0 // loop_footer_branch
    %11 = sbr.rel target = $region3
  $region8: #{tpu_custom_call.1} parent=0 // loop_exit
    _

</llo_original>
